<compile_context>
chip_gen: v6e
topology: v6e:2x2x1
jax: 0.10.0
libtpu: 0.0.40
codegen_flags: <defaults>
</compile_context>

<pallas_src>
import functools

import jax
import jax.numpy as jnp
from jax.experimental import pallas as pl
from jax.experimental.pallas import tpu as pltpu


def mlp_kernel(x_ref, w1_ref, b1_ref, w2_ref, b2_ref, o_ref):
    x = x_ref[...]            # (3, TB)  f32
    w1 = w1_ref[...]          # (10, 3)
    b1 = b1_ref[...]          # (10, 1)
    w2 = w2_ref[...]          # (10, 1)

    # fc1 on the MXU.  HIGHEST precision => full f32 passes (a plain bf16 pass
    # would break the 1e-5 tolerance).  Bias add + ReLU stay on the VPU.
    h = jnp.dot(w1, x,
                preferred_element_type=jnp.float32,
                precision=jax.lax.Precision.HIGHEST)          # (10, TB)
    h = jnp.maximum(h + b1, 0.0)

    # fc2 (out_features=1): elementwise multiply + XLU sublane reduce,
    # bias read as an SMEM scalar.
    y = jnp.sum(w2 * h, axis=0, keepdims=True) + b2_ref[0, 0]  # (1, TB)
    o_ref[...] = y.astype(o_ref.dtype)


def _round_up(n, m):
    return ((n + m - 1) // m) * m


@functools.partial(jax.jit, static_argnames=("block_b",))
def simple_nn_forward(x, w1, b1, w2, b2, *, block_b=None):
    """Forward pass of SimpleNN.

    x : (B, 3) f32
    w1: (10, 3), b1: (10,), w2: (1, 10), b2: (1,)   (PyTorch nn.Linear layout)
    Returns (B, 1) f32.
    """
    B = x.shape[0]
    bp_min = _round_up(B, 128)
    if block_b is None:
        # Big tiles amortize the ~0.35 us/grid-step overhead; cap keeps the
        # double-buffered working set tiny even on v7x (64 MiB VMEM).  Aiming
        # for ~8 blocks once the batch is large keeps >=2 blocks so the
        # "parallel" axis can shard across v7x's two TensorCores.
        block_b = min(32768, max(2048, _round_up(pl.cdiv(bp_min, 8), 128)))
        block_b = max(128, min(block_b, bp_min))
    n_blocks = pl.cdiv(bp_min, block_b)
    bp = n_blocks * block_b

    # Lane-dense layout: batch on the 128-lane axis, zero-padded to a tile
    # multiple.  jnp.pad on the transposed view lets XLA fuse transpose+pad
    # into a single HBM pass.  Padded columns compute garbage that is sliced
    # off below (never returned).
    x_t = jnp.pad(x.astype(jnp.float32).T, ((0, 0), (0, bp - B)))
    w1_m = w1.astype(jnp.float32)                   # (10, 3)
    b1_c = b1.reshape(10, 1).astype(jnp.float32)    # (10, 1)
    w2_c = w2.reshape(10, 1).astype(jnp.float32)    # (1, 10) -> (10, 1) column
    b2_s = b2.reshape(1, 1).astype(jnp.float32)     # SMEM scalar

    y_t = pl.pallas_call(
        mlp_kernel,
        out_shape=jax.ShapeDtypeStruct((1, bp), jnp.float32),
        grid=(n_blocks,),
        in_specs=[
            pl.BlockSpec((3, block_b), lambda i: (0, i)),        # xT tile (pipelined)
            pl.BlockSpec((10, 3), lambda i: (0, 0)),             # W1, VMEM-resident
            pl.BlockSpec((10, 1), lambda i: (0, 0)),             # b1, VMEM-resident
            pl.BlockSpec((10, 1), lambda i: (0, 0)),             # W2 col, VMEM-resident
            pl.BlockSpec(memory_space=pltpu.MemorySpace.SMEM),   # b2 scalar in SMEM
        ],
        out_specs=pl.BlockSpec((1, block_b), lambda i: (0, i)),  # lane-dense output
        compiler_params=pltpu.CompilerParams(
            dimension_semantics=("parallel",),
            vmem_limit_bytes=32 * 1024 * 1024,
        ),
        cost_estimate=pl.CostEstimate(
            flops=100 * bp, transcendentals=0, bytes_accessed=16 * bp + 256),
    )(x_t, w1_m, b1_c, w2_c, b2_s)

    # Callers that can consume the lane-major (1, B) slab directly should take
    # y_t[:, :B] to skip this extra layout pass; (B, 1) preserves the PyTorch
    # module's output shape.
    return y_t[0, :B].reshape(B, 1)


def init_params(key):
    # PyTorch nn.Linear default init: U(-1/sqrt(fan_in), 1/sqrt(fan_in)),
    # weights stored in PyTorch (out, in) orientation.
    k1, k2, k3, k4 = jax.random.split(key, 4)
    bound1 = 1.0 / jnp.sqrt(3.0)
    bound2 = 1.0 / jnp.sqrt(10.0)
    w1 = jax.random.uniform(k1, (10, 3), jnp.float32, -bound1, bound1)
    b1 = jax.random.uniform(k2, (10,), jnp.float32, -bound1, bound1)
    w2 = jax.random.uniform(k3, (1, 10), jnp.float32, -bound2, bound2)
    b2 = jax.random.uniform(k4, (1,), jnp.float32, -bound2, bound2)
    return w1, b1, w2, b2


if __name__ == "__main__":
    key = jax.random.PRNGKey(0)
    kx, kp = jax.random.split(key)
    B = 2
    x = jax.random.normal(kx, (B, 3), jnp.float32)
    w1, b1, w2, b2 = init_params(kp)

    out = simple_nn_forward(x, w1, b1, w2, b2)
    jax.block_until_ready(out)

    # Reference in plain JAX (same math as the PyTorch forward).
    ref = jnp.maximum(x @ w1.T + b1, 0.0) @ w2.T + b2
    assert out.shape == (B, 1)
    assert jnp.allclose(out, ref, atol=1e-5, rtol=1e-5)

    # Second check exercising the multi-tile grid + batch-padding path.
    B2 = 300
    x2 = jax.random.normal(jax.random.PRNGKey(1), (B2, 3), jnp.float32)
    out2 = simple_nn_forward(x2, w1, b1, w2, b2, block_b=128)
    jax.block_until_ready(out2)
    ref2 = jnp.maximum(x2 @ w1.T + b1, 0.0) @ w2.T + b2
    assert out2.shape == (B2, 1)
    assert jnp.allclose(out2, ref2, atol=1e-5, rtol=1e-5)

    print("KERNEL_OK")
</pallas_src>

<mosaic_0001>
module attributes {stable_mosaic.version = 11 : i64} {
  func.func @mlp_kernel(%arg0: i32, %arg1: memref<3x128xf32, #tpu.memory_space<vmem>>, %arg2: memref<10x3xf32, #tpu.memory_space<vmem>>, %arg3: memref<10x1xf32, #tpu.memory_space<vmem>>, %arg4: memref<10x1xf32, #tpu.memory_space<vmem>>, %arg5: memref<1x1xf32, #tpu.memory_space<smem>>, %arg6: memref<1x128xf32, #tpu.memory_space<vmem>>) attributes {dimension_semantics = [#tpu.dimension_semantics<parallel>], iteration_bounds = array<i64: 1>, scalar_prefetch = 0 : i64, scratch_operands = 0 : i64, tpu.core_type = #tpu.core_type<tc>, window_params = [{transform_indices = @transform_0, window_bounds = array<i64: 3, 128>}, {pipeline_mode = #tpu.pipeline_mode<synchronous>, transform_indices = @transform_1, window_bounds = array<i64: 10, 3>}, {pipeline_mode = #tpu.pipeline_mode<synchronous>, transform_indices = @transform_2, window_bounds = array<i64: 10, 1>}, {pipeline_mode = #tpu.pipeline_mode<synchronous>, transform_indices = @transform_3, window_bounds = array<i64: 10, 1>}, {transform_indices = @transform_4, window_bounds = array<i64: 1, 1>}, {transform_indices = @transform_5, window_bounds = array<i64: 1, 128>}]} {
    %c0 = arith.constant 0 : index
    %c0_0 = arith.constant 0 : index
    %0 = vector.load %arg1[%c0, %c0_0] : memref<3x128xf32, #tpu.memory_space<vmem>>, vector<3x128xf32>
    %c0_1 = arith.constant 0 : index
    %c0_2 = arith.constant 0 : index
    %1 = vector.load %arg2[%c0_1, %c0_2] : memref<10x3xf32, #tpu.memory_space<vmem>>, vector<10x3xf32>
    %c0_3 = arith.constant 0 : index
    %c0_4 = arith.constant 0 : index
    %2 = vector.load %arg3[%c0_3, %c0_4] : memref<10x1xf32, #tpu.memory_space<vmem>>, vector<10x1xf32>
    %c0_5 = arith.constant 0 : index
    %c0_6 = arith.constant 0 : index
    %3 = vector.load %arg4[%c0_5, %c0_6] : memref<10x1xf32, #tpu.memory_space<vmem>>, vector<10x1xf32>
    %cst = arith.constant dense<0.000000e+00> : vector<10x128xf32>
    %4 = tpu.matmul %1, %0, %cst {dimension_numbers = #tpu.dot_dimension_numbers<[1], [0], [0], [1], [0, 0, 1, 1], [], []>, precision = #tpu.contract_precision<fp32>} : vector<10x3xf32>, vector<3x128xf32>, vector<10x128xf32> -> vector<10x128xf32>
    %5 = vector.broadcast %2 : vector<10x1xf32> to vector<10x128xf32>
    %6 = arith.addf %4, %5 : vector<10x128xf32>
    %cst_7 = arith.constant 0.000000e+00 : f32
    %7 = vector.broadcast %cst_7 : f32 to vector<10x128xf32>
    %8 = arith.maximumf %6, %7 : vector<10x128xf32>
    %9 = vector.broadcast %3 : vector<10x1xf32> to vector<10x128xf32>
    %10 = arith.mulf %9, %8 : vector<10x128xf32>
    %cst_8 = arith.constant dense<0.000000e+00> : vector<128xf32>
    %11 = vector.multi_reduction <add>, %10, %cst_8 [0] : vector<10x128xf32> to vector<128xf32>
    %12 = vector.shape_cast %11 : vector<128xf32> to vector<1x128xf32>
    %c0_9 = arith.constant 0 : index
    %c0_10 = arith.constant 0 : index
    %13 = memref.load %arg5[%c0_9, %c0_10] : memref<1x1xf32, #tpu.memory_space<smem>>
    %14 = vector.broadcast %13 : f32 to vector<1x128xf32>
    %15 = arith.addf %12, %14 : vector<1x128xf32>
    %c0_11 = arith.constant 0 : index
    %c0_12 = arith.constant 0 : index
    %16 = vector.load %arg6[%c0_11, %c0_12] : memref<1x128xf32, #tpu.memory_space<vmem>>, vector<1x128xf32>
    tpu.vector_store %arg6[%c0_11, %c0_12], %15 {strides = array<i32>} : memref<1x128xf32, #tpu.memory_space<vmem>>, vector<1x128xf32>,
    return
  }
  func.func @transform_0(%arg0: i32) -> (i32, i32) {
    %c0_i32 = arith.constant 0 : i32
    %c0_i32_0 = arith.constant 0 : i32
    return %c0_i32, %arg0 : i32, i32
  }
  func.func @transform_1(%arg0: i32) -> (i32, i32) {
    %c0_i32 = arith.constant 0 : i32
    %c0_i32_0 = arith.constant 0 : i32
    %c0_i32_1 = arith.constant 0 : i32
    return %c0_i32, %c0_i32_0 : i32, i32
  }
  func.func @transform_2(%arg0: i32) -> (i32, i32) {
    %c0_i32 = arith.constant 0 : i32
    %c0_i32_0 = arith.constant 0 : i32
    %c0_i32_1 = arith.constant 0 : i32
    return %c0_i32, %c0_i32_0 : i32, i32
  }
  func.func @transform_3(%arg0: i32) -> (i32, i32) {
    %c0_i32 = arith.constant 0 : i32
    %c0_i32_0 = arith.constant 0 : i32
    %c0_i32_1 = arith.constant 0 : i32
    return %c0_i32, %c0_i32_0 : i32, i32
  }
  func.func @transform_4(%arg0: i32) -> (i32, i32) {
    %c0_i32 = arith.constant 0 : i32
    %c0_i32_0 = arith.constant 0 : i32
    %c0_i32_1 = arith.constant 0 : i32
    return %c0_i32, %c0_i32_0 : i32, i32
  }
  func.func @transform_5(%arg0: i32) -> (i32, i32) {
    %c0_i32 = arith.constant 0 : i32
    %c0_i32_0 = arith.constant 0 : i32
    return %c0_i32, %arg0 : i32, i32
  }
}

</mosaic_0001>

<llo_original>
// kernel: simple_nn_forward.1
$region0: #{simple_nn_forward.1}
  #allocation0 [shape = 'u32[]', space=smem, size = 0x4, offset = 0x4, fixed_abs, tag = 'smem constant byte address 0x4 - core index']
  #allocation1 [shape = 'u32[144,128]{1,0:T(1,128)}', space=vmem, size = 0x12000, scoped, tag = 'internal scratch']
  #allocation2 [shape = 'f32[1,1]{1,0:T(1,128)S(6)}', space=smem, size = 0x200, scoped, tag = 'scoped memory for simple_nn_forward.1']
  %s0 = inlined_call_operand.vmem [shape: f32[3,128], index: 0, kind: input, shape index: {}]
  %s1 = inlined_call_operand.vmem [shape: f32[10,3], index: 1, kind: input, shape index: {}]
  %s2 = inlined_call_operand.vmem [shape: f32[10,1], index: 2, kind: input, shape index: {}]
  %s3 = inlined_call_operand.vmem [shape: f32[10,1], index: 3, kind: input, shape index: {}]
  %s4 = inlined_call_operand.<no memory space> [shape: f32[1,1], index: 4, kind: input, shape index: {}]
  %s5 = inlined_call_operand.vmem [shape: f32[1,128], index: 5, kind: output, shape index: {}]
  %s6 = sld [smem:[#allocation0]]
  $region30: #{simple_nn_forward.1} parent=0
    _
  %s8 = ssub.s32 1, %s6
  %s9 = scalar_select 0, %s8, %s6
  %10 = sst [smem:[#allocation2]] %s4
  // Predicated region
  $region2: #{simple_nn_forward.1} parent=0 // pred_check
    _
  $region3: #{simple_nn_forward.1} parent=0 // pred_check_branch
    %12 = sbr.rel (0) target = $region5
  $region4: #{simple_nn_forward.1} parent=0 // pred_region
    _
  $region5: #{simple_nn_forward.1} parent=0 // pred_fallthru
    _
  // Predicated region
  $region6: #{simple_nn_forward.1} parent=0 // pred_check
    _
  $region7: #{simple_nn_forward.1} parent=0 // pred_check_branch
    %14 = sbr.rel (0) target = $region9
  $region8: #{simple_nn_forward.1} parent=0 // pred_region
    _
  $region9: #{simple_nn_forward.1} parent=0 // pred_fallthru
    _
  // Predicated region
  $region10: #{simple_nn_forward.1} parent=0 // pred_check
    _
  $region11: #{simple_nn_forward.1} parent=0 // pred_check_branch
    %16 = sbr.rel (0) target = $region13
  $region12: #{simple_nn_forward.1} parent=0 // pred_region
    _
  $region13: #{simple_nn_forward.1} parent=0 // pred_fallthru
    _
  // Predicated region
  $region14: #{simple_nn_forward.1} parent=0 // pred_check
    _
  $region15: #{simple_nn_forward.1} parent=0 // pred_check_branch
    %18 = sbr.rel (0) target = $region17
  $region16: #{simple_nn_forward.1} parent=0 // pred_region
    _
  $region17: #{simple_nn_forward.1} parent=0 // pred_fallthru
    _
  // Predicated region
  $region18: #{simple_nn_forward.1} parent=0 // pred_check
    _
  $region19: #{simple_nn_forward.1} parent=0 // pred_check_branch
    %20 = sbr.rel (0) target = $region21
  $region20: #{simple_nn_forward.1} parent=0 // pred_region
    _
  $region21: #{simple_nn_forward.1} parent=0 // pred_fallthru
    _
  %v21 = vld [vmem:[%s0] sm:$0x7]
  %v22 = vld [vmem:[%s1] sm:$0xff]
  %v23 = vld [vmem:[%s1 + $0x8] sm:$0x3]
  %v24 = vld [vmem:[%s2] sm:$0xff]
  %v25 = vld [vmem:[%s2 + $0x8] sm:$0x3]
  %v26 = vld [vmem:[%s3] sm:$0xff]
  %v27 = vld [vmem:[%s3 + $0x8] sm:$0x3]
  %29 = vset.pattern.permute.xlu0 0
  %30 = vperm.xlu0 %29, %v24
  %v31 = vpop.permute.xlu0 %30
  %34 = vset.pattern.permute.xlu0 0
  %35 = vperm.xlu0 %34, %v25
  %v36 = vpop.permute.xlu0 %35
  %vm38 = vcmask 23552
  %v40 = vsel %vm38, %v22, 0
  %v43 = vsel %vm38, %v23, 0
  %vm45 = vcmask 1042432
  %v47 = vsel %vm45, %v21, 0
  %49 = vmatprep.subr.mxu0 0.0
  %50 = vmatpush1.msra.mxu0 0.0
  %51 = vmatprep.subr.mxu0 0.0
  %52 = vmatpush1.msra.mxu0 0.0
  %53 = vmatprep.subr.mxu0 0.0
  %54 = vmatpush1.msra.mxu0 0.0
  %55 = vmatprep.subr.mxu0 0.0
  %56 = vmatpush1.msra.mxu0 0.0
  %57 = vmatprep.subr.mxu0 0.0
  %58 = vmatpush1.msra.mxu0 0.0
  %59 = vmatprep.subr.mxu0 0.0
  %60 = vmatpush1.msra.mxu0 0.0
  %61 = vmatprep.subr.mxu0 0.0
  %62 = vmatpush1.msra.mxu0 0.0
  %63 = vmatprep.subr.mxu0 0.0
  %64 = vmatpush1.msra.mxu0 0.0
  %65 = vmatprep.subr.mxu0 0.0
  %66 = vmatpush1.msra.mxu0 0.0
  %67 = vmatprep.subr.mxu0 0.0
  %68 = vmatpush1.msra.mxu0 0.0
  %69 = vmatprep.subr.mxu0 0.0
  %70 = vmatpush1.msra.mxu0 0.0
  %71 = vmatprep.subr.mxu0 0.0
  %72 = vmatpush1.msra.mxu0 0.0
  %73 = vmatprep.subr.mxu0 0.0
  %74 = vmatpush1.msra.mxu0 0.0
  %75 = vmatprep.subr.mxu0 0.0
  %76 = vmatpush1.msra.mxu0 0.0
  %77 = vmatprep.subr.mxu0 0.0
  %78 = vmatpush1.msra.mxu0 0.0
  %79 = vmatprep.subr.mxu0 0.0
  %v80 = vand.u32 %v47, 4294901760
  %81 = vmatpush1.msra.mxu0 %v80
  %82 = vmatprep.subr.mxu0 0.0
  %83 = vmatpush2.msra.mxu0 0.0
  %84 = vmatprep.subr.mxu0 0.0
  %85 = vmatpush2.msra.mxu0 0.0
  %86 = vmatprep.subr.mxu0 0.0
  %87 = vmatpush2.msra.mxu0 0.0
  %88 = vmatprep.subr.mxu0 0.0
  %89 = vmatpush2.msra.mxu0 0.0
  %90 = vmatprep.subr.mxu0 0.0
  %91 = vmatpush2.msra.mxu0 0.0
  %92 = vmatprep.subr.mxu0 0.0
  %93 = vmatpush2.msra.mxu0 0.0
  %94 = vmatprep.subr.mxu0 0.0
  %95 = vmatpush2.msra.mxu0 0.0
  %96 = vmatprep.subr.mxu0 0.0
  %97 = vmatpush2.msra.mxu0 0.0
  %98 = vmatprep.subr.mxu0 0.0
  %99 = vmatpush2.msra.mxu0 0.0
  %100 = vmatprep.subr.mxu0 0.0
  %101 = vmatpush2.msra.mxu0 0.0
  %102 = vmatprep.subr.mxu0 0.0
  %103 = vmatpush2.msra.mxu0 0.0
  %104 = vmatprep.subr.mxu0 0.0
  %105 = vmatpush2.msra.mxu0 0.0
  %106 = vmatprep.subr.mxu0 0.0
  %107 = vmatpush2.msra.mxu0 0.0
  %108 = vmatprep.subr.mxu0 0.0
  %109 = vmatpush2.msra.mxu0 0.0
  %110 = vmatprep.subr.mxu0 0.0
  %111 = vmatpush2.msra.mxu0 0.0
  %112 = vmatprep.subr.mxu0 0.0
  %113 = vmatpush2.msra.mxu0 0.0
  %114 = vmatprep.mubr.f32.mxu0 0.0
  %v115 = vand.u32 %v40, 4294901760
  %v116 = vsub.f32 %v40, %v115
  %v117 = vand.u32 %v116, 4294901760
  %v118 = vsub.f32 %v116, %v117
  %v119 = vand.u32 %v118, 4294901760
  %120 = vmatmul.mubr.f32.gmra.mxu0 %v119
  %v121 = vpop.f32.mrf.mxu0
  %v122 = vadd.f32 %v31, %v121
  %v123 = vpop.f32.mrf.mxu0
  %124 = vmatprep.mubr.f32.mxu0 0.0
  %v125 = vand.u32 %v43, 4294901760
  %v126 = vsub.f32 %v43, %v125
  %v127 = vand.u32 %v126, 4294901760
  %v128 = vsub.f32 %v126, %v127
  %v129 = vand.u32 %v128, 4294901760
  %130 = vmatmul.mubr.f32.gmra.mxu0 %v129
  %v131 = vpop.f32.mrf.mxu0
  %v132 = vadd.f32 %v36, %v131
  %v133 = vpop.f32.mrf.mxu0
  %134 = vdwg.mxu0
  %135 = vmatprep.subr.mxu0 0.0
  %136 = vmatpush1.msra.mxu0 0.0
  %137 = vmatprep.subr.mxu0 0.0
  %138 = vmatpush1.msra.mxu0 0.0
  %139 = vmatprep.subr.mxu0 0.0
  %140 = vmatpush1.msra.mxu0 0.0
  %141 = vmatprep.subr.mxu0 0.0
  %142 = vmatpush1.msra.mxu0 0.0
  %143 = vmatprep.subr.mxu0 0.0
  %144 = vmatpush1.msra.mxu0 0.0
  %145 = vmatprep.subr.mxu0 0.0
  %146 = vmatpush1.msra.mxu0 0.0
  %147 = vmatprep.subr.mxu0 0.0
  %148 = vmatpush1.msra.mxu0 0.0
  %149 = vmatprep.subr.mxu0 0.0
  %150 = vmatpush1.msra.mxu0 0.0
  %151 = vmatprep.subr.mxu0 0.0
  %152 = vmatpush1.msra.mxu0 0.0
  %153 = vmatprep.subr.mxu0 0.0
  %154 = vmatpush1.msra.mxu0 0.0
  %155 = vmatprep.subr.mxu0 0.0
  %156 = vmatpush1.msra.mxu0 0.0
  %157 = vmatprep.subr.mxu0 0.0
  %158 = vmatpush1.msra.mxu0 0.0
  %159 = vmatprep.subr.mxu0 0.0
  %160 = vmatpush1.msra.mxu0 0.0
  %161 = vmatprep.subr.mxu0 0.0
  %162 = vmatpush1.msra.mxu0 0.0
  %163 = vmatprep.subr.mxu0 0.0
  %164 = vmatpush1.msra.mxu0 0.0
  %165 = vmatprep.subr.mxu0 0.0
  %v166 = vand.u32 %v47, 4294901760
  %v167 = vsub.f32 %v47, %v166
  %v168 = vand.u32 %v167, 4294901760
  %v169 = vsub.f32 %v167, %v168
  %v170 = vand.u32 %v169, 4294901760
  %171 = vmatpush1.msra.mxu0 %v170
  %172 = vmatprep.subr.mxu0 0.0
  %173 = vmatpush2.msra.mxu0 0.0
  %174 = vmatprep.subr.mxu0 0.0
  %175 = vmatpush2.msra.mxu0 0.0
  %176 = vmatprep.subr.mxu0 0.0
  %177 = vmatpush2.msra.mxu0 0.0
  %178 = vmatprep.subr.mxu0 0.0
  %179 = vmatpush2.msra.mxu0 0.0
  %180 = vmatprep.subr.mxu0 0.0
  %181 = vmatpush2.msra.mxu0 0.0
  %182 = vmatprep.subr.mxu0 0.0
  %183 = vmatpush2.msra.mxu0 0.0
  %184 = vmatprep.subr.mxu0 0.0
  %185 = vmatpush2.msra.mxu0 0.0
  %186 = vmatprep.subr.mxu0 0.0
  %187 = vmatpush2.msra.mxu0 0.0
  %188 = vmatprep.subr.mxu0 0.0
  %189 = vmatpush2.msra.mxu0 0.0
  %190 = vmatprep.subr.mxu0 0.0
  %191 = vmatpush2.msra.mxu0 0.0
  %192 = vmatprep.subr.mxu0 0.0
  %193 = vmatpush2.msra.mxu0 0.0
  %194 = vmatprep.subr.mxu0 0.0
  %195 = vmatpush2.msra.mxu0 0.0
  %196 = vmatprep.subr.mxu0 0.0
  %197 = vmatpush2.msra.mxu0 0.0
  %198 = vmatprep.subr.mxu0 0.0
  %199 = vmatpush2.msra.mxu0 0.0
  %200 = vmatprep.subr.mxu0 0.0
  %201 = vmatpush2.msra.mxu0 0.0
  %202 = vmatprep.subr.mxu0 0.0
  %203 = vmatpush2.msra.mxu0 0.0
  %204 = vmatprep.mubr.f32.mxu0 0.0
  %v205 = vand.u32 %v40, 4294901760
  %206 = vmatmul.mubr.f32.gmra.mxu0 %v205
  %v207 = vpop.f32.mrf.mxu0
  %v208 = vadd.f32 %v122, %v207
  %v209 = vpop.f32.mrf.mxu0
  %210 = vmatprep.mubr.f32.mxu0 0.0
  %v211 = vand.u32 %v43, 4294901760
  %212 = vmatmul.mubr.f32.gmra.mxu0 %v211
  %v213 = vpop.f32.mrf.mxu0
  %v214 = vadd.f32 %v132, %v213
  %v215 = vpop.f32.mrf.mxu0
  %216 = vdwg.mxu0
  %217 = vmatprep.subr.mxu0 0.0
  %218 = vmatpush1.msra.mxu0 0.0
  %219 = vmatprep.subr.mxu0 0.0
  %220 = vmatpush1.msra.mxu0 0.0
  %221 = vmatprep.subr.mxu0 0.0
  %222 = vmatpush1.msra.mxu0 0.0
  %223 = vmatprep.subr.mxu0 0.0
  %224 = vmatpush1.msra.mxu0 0.0
  %225 = vmatprep.subr.mxu0 0.0
  %226 = vmatpush1.msra.mxu0 0.0
  %227 = vmatprep.subr.mxu0 0.0
  %228 = vmatpush1.msra.mxu0 0.0
  %229 = vmatprep.subr.mxu0 0.0
  %230 = vmatpush1.msra.mxu0 0.0
  %231 = vmatprep.subr.mxu0 0.0
  %232 = vmatpush1.msra.mxu0 0.0
  %233 = vmatprep.subr.mxu0 0.0
  %234 = vmatpush1.msra.mxu0 0.0
  %235 = vmatprep.subr.mxu0 0.0
  %236 = vmatpush1.msra.mxu0 0.0
  %237 = vmatprep.subr.mxu0 0.0
  %238 = vmatpush1.msra.mxu0 0.0
  %239 = vmatprep.subr.mxu0 0.0
  %240 = vmatpush1.msra.mxu0 0.0
  %241 = vmatprep.subr.mxu0 0.0
  %242 = vmatpush1.msra.mxu0 0.0
  %243 = vmatprep.subr.mxu0 0.0
  %244 = vmatpush1.msra.mxu0 0.0
  %245 = vmatprep.subr.mxu0 0.0
  %246 = vmatpush1.msra.mxu0 0.0
  %247 = vmatprep.subr.mxu0 0.0
  %v248 = vand.u32 %v47, 4294901760
  %v249 = vsub.f32 %v47, %v248
  %250 = vmatpush1.msra.mxu0 %v249
  %251 = vmatprep.subr.mxu0 0.0
  %252 = vmatpush2.msra.mxu0 0.0
  %253 = vmatprep.subr.mxu0 0.0
  %254 = vmatpush2.msra.mxu0 0.0
  %255 = vmatprep.subr.mxu0 0.0
  %256 = vmatpush2.msra.mxu0 0.0
  %257 = vmatprep.subr.mxu0 0.0
  %258 = vmatpush2.msra.mxu0 0.0
  %259 = vmatprep.subr.mxu0 0.0
  %260 = vmatpush2.msra.mxu0 0.0
  %261 = vmatprep.subr.mxu0 0.0
  %262 = vmatpush2.msra.mxu0 0.0
  %263 = vmatprep.subr.mxu0 0.0
  %264 = vmatpush2.msra.mxu0 0.0
  %265 = vmatprep.subr.mxu0 0.0
  %266 = vmatpush2.msra.mxu0 0.0
  %267 = vmatprep.subr.mxu0 0.0
  %268 = vmatpush2.msra.mxu0 0.0
  %269 = vmatprep.subr.mxu0 0.0
  %270 = vmatpush2.msra.mxu0 0.0
  %271 = vmatprep.subr.mxu0 0.0
  %272 = vmatpush2.msra.mxu0 0.0
  %273 = vmatprep.subr.mxu0 0.0
  %274 = vmatpush2.msra.mxu0 0.0
  %275 = vmatprep.subr.mxu0 0.0
  %276 = vmatpush2.msra.mxu0 0.0
  %277 = vmatprep.subr.mxu0 0.0
  %278 = vmatpush2.msra.mxu0 0.0
  %279 = vmatprep.subr.mxu0 0.0
  %280 = vmatpush2.msra.mxu0 0.0
  %281 = vmatprep.subr.mxu0 0.0
  %282 = vmatpush2.msra.mxu0 0.0
  %283 = vmatprep.mubr.f32.mxu0 0.0
  %v284 = vand.u32 %v40, 4294901760
  %v285 = vsub.f32 %v40, %v284
  %286 = vmatmul.mubr.f32.gmra.mxu0 %v285
  %v287 = vpop.f32.mrf.mxu0
  %v288 = vadd.f32 %v208, %v287
  %v289 = vpop.f32.mrf.mxu0
  %290 = vmatprep.mubr.f32.mxu0 0.0
  %v291 = vand.u32 %v43, 4294901760
  %v292 = vsub.f32 %v43, %v291
  %293 = vmatmul.mubr.f32.gmra.mxu0 %v292
  %v294 = vpop.f32.mrf.mxu0
  %v295 = vadd.f32 %v214, %v294
  %v296 = vpop.f32.mrf.mxu0
  %297 = vdwg.mxu0
  %298 = vmatprep.subr.mxu0 0.0
  %299 = vmatpush1.msra.mxu0 0.0
  %300 = vmatprep.subr.mxu0 0.0
  %301 = vmatpush1.msra.mxu0 0.0
  %302 = vmatprep.subr.mxu0 0.0
  %303 = vmatpush1.msra.mxu0 0.0
  %304 = vmatprep.subr.mxu0 0.0
  %305 = vmatpush1.msra.mxu0 0.0
  %306 = vmatprep.subr.mxu0 0.0
  %307 = vmatpush1.msra.mxu0 0.0
  %308 = vmatprep.subr.mxu0 0.0
  %309 = vmatpush1.msra.mxu0 0.0
  %310 = vmatprep.subr.mxu0 0.0
  %311 = vmatpush1.msra.mxu0 0.0
  %312 = vmatprep.subr.mxu0 0.0
  %313 = vmatpush1.msra.mxu0 0.0
  %314 = vmatprep.subr.mxu0 0.0
  %315 = vmatpush1.msra.mxu0 0.0
  %316 = vmatprep.subr.mxu0 0.0
  %317 = vmatpush1.msra.mxu0 0.0
  %318 = vmatprep.subr.mxu0 0.0
  %319 = vmatpush1.msra.mxu0 0.0
  %320 = vmatprep.subr.mxu0 0.0
  %321 = vmatpush1.msra.mxu0 0.0
  %322 = vmatprep.subr.mxu0 0.0
  %323 = vmatpush1.msra.mxu0 0.0
  %324 = vmatprep.subr.mxu0 0.0
  %325 = vmatpush1.msra.mxu0 0.0
  %326 = vmatprep.subr.mxu0 0.0
  %327 = vmatpush1.msra.mxu0 0.0
  %328 = vmatprep.subr.mxu0 0.0
  %v329 = vand.u32 %v47, 4294901760
  %330 = vmatpush1.msra.mxu0 %v329
  %331 = vmatprep.subr.mxu0 0.0
  %332 = vmatpush2.msra.mxu0 0.0
  %333 = vmatprep.subr.mxu0 0.0
  %334 = vmatpush2.msra.mxu0 0.0
  %335 = vmatprep.subr.mxu0 0.0
  %336 = vmatpush2.msra.mxu0 0.0
  %337 = vmatprep.subr.mxu0 0.0
  %338 = vmatpush2.msra.mxu0 0.0
  %339 = vmatprep.subr.mxu0 0.0
  %340 = vmatpush2.msra.mxu0 0.0
  %341 = vmatprep.subr.mxu0 0.0
  %342 = vmatpush2.msra.mxu0 0.0
  %343 = vmatprep.subr.mxu0 0.0
  %344 = vmatpush2.msra.mxu0 0.0
  %345 = vmatprep.subr.mxu0 0.0
  %346 = vmatpush2.msra.mxu0 0.0
  %347 = vmatprep.subr.mxu0 0.0
  %348 = vmatpush2.msra.mxu0 0.0
  %349 = vmatprep.subr.mxu0 0.0
  %350 = vmatpush2.msra.mxu0 0.0
  %351 = vmatprep.subr.mxu0 0.0
  %352 = vmatpush2.msra.mxu0 0.0
  %353 = vmatprep.subr.mxu0 0.0
  %354 = vmatpush2.msra.mxu0 0.0
  %355 = vmatprep.subr.mxu0 0.0
  %356 = vmatpush2.msra.mxu0 0.0
  %357 = vmatprep.subr.mxu0 0.0
  %358 = vmatpush2.msra.mxu0 0.0
  %359 = vmatprep.subr.mxu0 0.0
  %360 = vmatpush2.msra.mxu0 0.0
  %361 = vmatprep.subr.mxu0 0.0
  %362 = vmatpush2.msra.mxu0 0.0
  %363 = vmatprep.mubr.f32.mxu0 0.0
  %v364 = vand.u32 %v40, 4294901760
  %v365 = vsub.f32 %v40, %v364
  %v366 = vand.u32 %v365, 4294901760
  %367 = vmatmul.mubr.f32.gmra.mxu0 %v366
  %v368 = vpop.f32.mrf.mxu0
  %v369 = vadd.f32 %v288, %v368
  %v370 = vpop.f32.mrf.mxu0
  %371 = vmatprep.mubr.f32.mxu0 0.0
  %v372 = vand.u32 %v43, 4294901760
  %v373 = vsub.f32 %v43, %v372
  %v374 = vand.u32 %v373, 4294901760
  %375 = vmatmul.mubr.f32.gmra.mxu0 %v374
  %v376 = vpop.f32.mrf.mxu0
  %v377 = vadd.f32 %v295, %v376
  %v378 = vpop.f32.mrf.mxu0
  %379 = vdwg.mxu0
  %380 = vmatprep.subr.mxu0 0.0
  %381 = vmatpush1.msra.mxu0 0.0
  %382 = vmatprep.subr.mxu0 0.0
  %383 = vmatpush1.msra.mxu0 0.0
  %384 = vmatprep.subr.mxu0 0.0
  %385 = vmatpush1.msra.mxu0 0.0
  %386 = vmatprep.subr.mxu0 0.0
  %387 = vmatpush1.msra.mxu0 0.0
  %388 = vmatprep.subr.mxu0 0.0
  %389 = vmatpush1.msra.mxu0 0.0
  %390 = vmatprep.subr.mxu0 0.0
  %391 = vmatpush1.msra.mxu0 0.0
  %392 = vmatprep.subr.mxu0 0.0
  %393 = vmatpush1.msra.mxu0 0.0
  %394 = vmatprep.subr.mxu0 0.0
  %395 = vmatpush1.msra.mxu0 0.0
  %396 = vmatprep.subr.mxu0 0.0
  %397 = vmatpush1.msra.mxu0 0.0
  %398 = vmatprep.subr.mxu0 0.0
  %399 = vmatpush1.msra.mxu0 0.0
  %400 = vmatprep.subr.mxu0 0.0
  %401 = vmatpush1.msra.mxu0 0.0
  %402 = vmatprep.subr.mxu0 0.0
  %403 = vmatpush1.msra.mxu0 0.0
  %404 = vmatprep.subr.mxu0 0.0
  %405 = vmatpush1.msra.mxu0 0.0
  %406 = vmatprep.subr.mxu0 0.0
  %407 = vmatpush1.msra.mxu0 0.0
  %408 = vmatprep.subr.mxu0 0.0
  %409 = vmatpush1.msra.mxu0 0.0
  %410 = vmatprep.subr.mxu0 0.0
  %v411 = vand.u32 %v47, 4294901760
  %v412 = vsub.f32 %v47, %v411
  %v413 = vand.u32 %v412, 4294901760
  %414 = vmatpush1.msra.mxu0 %v413
  %415 = vmatprep.subr.mxu0 0.0
  %416 = vmatpush2.msra.mxu0 0.0
  %417 = vmatprep.subr.mxu0 0.0
  %418 = vmatpush2.msra.mxu0 0.0
  %419 = vmatprep.subr.mxu0 0.0
  %420 = vmatpush2.msra.mxu0 0.0
  %421 = vmatprep.subr.mxu0 0.0
  %422 = vmatpush2.msra.mxu0 0.0
  %423 = vmatprep.subr.mxu0 0.0
  %424 = vmatpush2.msra.mxu0 0.0
  %425 = vmatprep.subr.mxu0 0.0
  %426 = vmatpush2.msra.mxu0 0.0
  %427 = vmatprep.subr.mxu0 0.0
  %428 = vmatpush2.msra.mxu0 0.0
  %429 = vmatprep.subr.mxu0 0.0
  %430 = vmatpush2.msra.mxu0 0.0
  %431 = vmatprep.subr.mxu0 0.0
  %432 = vmatpush2.msra.mxu0 0.0
  %433 = vmatprep.subr.mxu0 0.0
  %434 = vmatpush2.msra.mxu0 0.0
  %435 = vmatprep.subr.mxu0 0.0
  %436 = vmatpush2.msra.mxu0 0.0
  %437 = vmatprep.subr.mxu0 0.0
  %438 = vmatpush2.msra.mxu0 0.0
  %439 = vmatprep.subr.mxu0 0.0
  %440 = vmatpush2.msra.mxu0 0.0
  %441 = vmatprep.subr.mxu0 0.0
  %442 = vmatpush2.msra.mxu0 0.0
  %443 = vmatprep.subr.mxu0 0.0
  %444 = vmatpush2.msra.mxu0 0.0
  %445 = vmatprep.subr.mxu0 0.0
  %446 = vmatpush2.msra.mxu0 0.0
  %447 = vmatprep.mubr.f32.mxu0 0.0
  %v448 = vand.u32 %v40, 4294901760
  %449 = vmatmul.mubr.f32.gmra.mxu0 %v448
  %v450 = vpop.f32.mrf.mxu0
  %v451 = vadd.f32 %v369, %v450
  %v452 = vpop.f32.mrf.mxu0
  %453 = vmatprep.mubr.f32.mxu0 0.0
  %v454 = vand.u32 %v43, 4294901760
  %455 = vmatmul.mubr.f32.gmra.mxu0 %v454
  %v456 = vpop.f32.mrf.mxu0
  %v457 = vadd.f32 %v377, %v456
  %v458 = vpop.f32.mrf.mxu0
  %459 = vdwg.mxu0
  %460 = vmatprep.subr.mxu0 0.0
  %461 = vmatpush1.msra.mxu0 0.0
  %462 = vmatprep.subr.mxu0 0.0
  %463 = vmatpush1.msra.mxu0 0.0
  %464 = vmatprep.subr.mxu0 0.0
  %465 = vmatpush1.msra.mxu0 0.0
  %466 = vmatprep.subr.mxu0 0.0
  %467 = vmatpush1.msra.mxu0 0.0
  %468 = vmatprep.subr.mxu0 0.0
  %469 = vmatpush1.msra.mxu0 0.0
  %470 = vmatprep.subr.mxu0 0.0
  %471 = vmatpush1.msra.mxu0 0.0
  %472 = vmatprep.subr.mxu0 0.0
  %473 = vmatpush1.msra.mxu0 0.0
  %474 = vmatprep.subr.mxu0 0.0
  %475 = vmatpush1.msra.mxu0 0.0
  %476 = vmatprep.subr.mxu0 0.0
  %477 = vmatpush1.msra.mxu0 0.0
  %478 = vmatprep.subr.mxu0 0.0
  %479 = vmatpush1.msra.mxu0 0.0
  %480 = vmatprep.subr.mxu0 0.0
  %481 = vmatpush1.msra.mxu0 0.0
  %482 = vmatprep.subr.mxu0 0.0
  %483 = vmatpush1.msra.mxu0 0.0
  %484 = vmatprep.subr.mxu0 0.0
  %485 = vmatpush1.msra.mxu0 0.0
  %486 = vmatprep.subr.mxu0 0.0
  %487 = vmatpush1.msra.mxu0 0.0
  %488 = vmatprep.subr.mxu0 0.0
  %489 = vmatpush1.msra.mxu0 0.0
  %490 = vmatprep.subr.mxu0 0.0
  %v491 = vand.u32 %v47, 4294901760
  %492 = vmatpush1.msra.mxu0 %v491
  %493 = vmatprep.subr.mxu0 0.0
  %494 = vmatpush2.msra.mxu0 0.0
  %495 = vmatprep.subr.mxu0 0.0
  %496 = vmatpush2.msra.mxu0 0.0
  %497 = vmatprep.subr.mxu0 0.0
  %498 = vmatpush2.msra.mxu0 0.0
  %499 = vmatprep.subr.mxu0 0.0
  %500 = vmatpush2.msra.mxu0 0.0
  %501 = vmatprep.subr.mxu0 0.0
  %502 = vmatpush2.msra.mxu0 0.0
  %503 = vmatprep.subr.mxu0 0.0
  %504 = vmatpush2.msra.mxu0 0.0
  %505 = vmatprep.subr.mxu0 0.0
  %506 = vmatpush2.msra.mxu0 0.0
  %507 = vmatprep.subr.mxu0 0.0
  %508 = vmatpush2.msra.mxu0 0.0
  %509 = vmatprep.subr.mxu0 0.0
  %510 = vmatpush2.msra.mxu0 0.0
  %511 = vmatprep.subr.mxu0 0.0
  %512 = vmatpush2.msra.mxu0 0.0
  %513 = vmatprep.subr.mxu0 0.0
  %514 = vmatpush2.msra.mxu0 0.0
  %515 = vmatprep.subr.mxu0 0.0
  %516 = vmatpush2.msra.mxu0 0.0
  %517 = vmatprep.subr.mxu0 0.0
  %518 = vmatpush2.msra.mxu0 0.0
  %519 = vmatprep.subr.mxu0 0.0
  %520 = vmatpush2.msra.mxu0 0.0
  %521 = vmatprep.subr.mxu0 0.0
  %522 = vmatpush2.msra.mxu0 0.0
  %523 = vmatprep.subr.mxu0 0.0
  %524 = vmatpush2.msra.mxu0 0.0
  %525 = vmatprep.mubr.f32.mxu0 0.0
  %v526 = vand.u32 %v40, 4294901760
  %527 = vmatmul.mubr.f32.gmra.mxu0 %v526
  %v528 = vpop.f32.mrf.mxu0
  %v529 = vadd.f32 %v451, %v528
  %v530 = vpop.f32.mrf.mxu0
  %531 = vmatprep.mubr.f32.mxu0 0.0
  %v532 = vand.u32 %v43, 4294901760
  %533 = vmatmul.mubr.f32.gmra.mxu0 %v532
  %v534 = vpop.f32.mrf.mxu0
  %v535 = vadd.f32 %v457, %v534
  %v536 = vpop.f32.mrf.mxu0
  %537 = vdwg.mxu0
  %v538 = vmax.f32 %v529, 0.0
  %v539 = vmax.f32 %v535, 0.0
  %541 = vset.pattern.permute.xlu0 0
  %542 = vperm.xlu0 %541, %v26
  %v543 = vpop.permute.xlu0 %542
  %546 = vset.pattern.permute.xlu0 0
  %547 = vperm.xlu0 %546, %v27
  %v548 = vpop.permute.xlu0 %547
  %v550 = vmul.f32 %v543, %v538
  %v551 = vmul.f32 %v548, %v539
  %vm552 = vcmask 1041408
  %v553 = vsel %vm552, %v551, 0.0
  %v554 = vadd.f32 %v550, %v553
  %v555 = vrot.slane %v554, 4
  %v556 = vadd.f32 %v554, %v555
  %v557 = vrot.slane %v556, 2
  %v558 = vadd.f32 %v556, %v557
  %v559 = vrot.slane %v558, 1
  %v560 = vadd.f32 %v558, %v559
  %s561 = sld [smem:[#allocation2]]
  %v562 = vstv %s561
  %v563 = vadd.f32 %v560, %v562
  %564 = vst [vmem:[%s5] sm:$0x1] %v563
  // Predicated region
  $region22: #{simple_nn_forward.1} parent=0 // pred_check
    _
  $region23: #{simple_nn_forward.1} parent=0 // pred_check_branch
    %566 = sbr.rel (0) target = $region25
  $region24: #{simple_nn_forward.1} parent=0 // pred_region
    _
  $region25: #{simple_nn_forward.1} parent=0 // pred_fallthru
    _
  // Predicated region
  $region26: #{simple_nn_forward.1} parent=0 // pred_check
    _
  $region27: #{simple_nn_forward.1} parent=0 // pred_check_branch
    %568 = sbr.rel (0) target = $region29
  $region28: #{simple_nn_forward.1} parent=0 // pred_region
    _
  $region29: #{simple_nn_forward.1} parent=0 // pred_fallthru
    _

</llo_original>
